<compile_context>
chip_gen: v6e
topology: v6e:2x2x1
jax: 0.10.0
libtpu: 0.0.40
codegen_flags: <defaults>
</compile_context>

<pallas_src>
import jax
import jax.numpy as jnp
from jax import lax
from jax.experimental import pallas as pl
from jax.experimental.pallas import tpu as pltpu

BN_EPS = 1e-5


def _mlp_layer_kernel(x_ref, w_ref, gamma_ref, beta_ref, o_ref, acc_ref):
    k = pl.program_id(1)

    @pl.when(k == 0)
    def _():
        acc_ref[...] = jnp.zeros_like(acc_ref)

    # (N, tk) @ (tk, tn): RHS contracts dim 0 -> MXU-native layout, no
    # per-slab weight relayout on the XLU.  f32 accumulation on the MXU.
    acc_ref[...] += lax.dot_general(
        x_ref[...], w_ref[...],
        dimension_numbers=(((1,), (0,)), ((), ())),
        preferred_element_type=jnp.float32,
    )

    @pl.when(k == pl.num_programs(1) - 1)
    def _():
        # BatchNorm1d (training-mode batch stats) + SiLU epilogue, in f32,
        # on the finished accumulator.  Two-pass variance for stability.
        y = acc_ref[...]                                      # (N, tn) f32
        inv_n = 1.0 / y.shape[0]
        mean = jnp.sum(y, axis=0, keepdims=True) * inv_n
        centered = y - mean
        var = jnp.sum(centered * centered, axis=0, keepdims=True) * inv_n
        scale = gamma_ref[...].astype(jnp.float32) * lax.rsqrt(var + BN_EPS)
        z = centered * scale + beta_ref[...].astype(jnp.float32)
        o_ref[...] = (z * jax.nn.sigmoid(z)).astype(o_ref.dtype)


def _vmem_limit_bytes():
    # Per-generation VMEM cap: ~100 MiB usable on v5e/v6e (128 MiB physical),
    # ~56 MiB on v7x (64 MiB physical).  Conservative fallback if the query
    # is unavailable.
    cap = 64 * 1024 * 1024
    try:
        info = pltpu.get_tpu_info()
        cap = int(getattr(info, "vmem_capacity_bytes", cap))
    except Exception:
        pass
    return min(cap - 8 * 1024 * 1024, 100 * 1024 * 1024)


def _pick_tiles(n, in_f, out_f, itemsize, vmem_budget):
    """Largest lane-dense (tn, tk) that fits VMEM; prefer >= 2 output slabs."""
    tn_cands = [t for t in (512, 256, 128) if out_f % t == 0] or [out_f]
    tk_cands = [t for t in (512, 256, 128) if in_f % t == 0] or [in_f]

    def fits(tn, tk):
        by = (2 * n * tk * itemsize        # x block, double-buffered
              + 2 * tk * tn * itemsize     # W block, double-buffered
              + 2 * n * tn * itemsize      # out block, double-buffered
              + n * tn * 4                 # f32 accumulator scratch
              + 2 * 2 * tn * 4)            # gamma / beta blocks
        return by <= vmem_budget

    for prefer_multi_slab in (True, False):
        for tn in tn_cands:
            if prefer_multi_slab and out_f // tn < 2:
                continue  # v7x has 2 TensorCores: keep the parallel axis >= 2
            for tk in tk_cands:
                if fits(tn, tk):
                    return tn, tk
    return tn_cands[-1], tk_cands[-1]


def mlp_layer(x, weight, gamma, beta, *, bias=None):
    """SiLU(BatchNorm1d(Linear(x))).  x: (N, in_f); weight: (out_f, in_f).

    `bias` is accepted for interface parity with nn.Linear but ignored: it is
    mathematically cancelled by the train-mode BatchNorm mean subtraction.
    """
    del bias
    n, in_f = x.shape
    out_f = weight.shape[0]

    # Single XLA transpose outside the kernel -> MXU-native (in_f, out_f).
    wt = weight.T
    g2 = gamma.reshape(1, out_f)
    b2 = beta.reshape(1, out_f)

    itemsize = jnp.dtype(x.dtype).itemsize
    vmem_limit = _vmem_limit_bytes()
    tn, tk = _pick_tiles(n, in_f, out_f, itemsize,
                         vmem_limit - 2 * 1024 * 1024)
    grid = (out_f // tn, in_f // tk)  # (j: parallel, k: reduction, last)

    return pl.pallas_call(
        _mlp_layer_kernel,
        out_shape=jax.ShapeDtypeStruct((n, out_f), x.dtype),
        grid=grid,
        in_specs=[
            pl.BlockSpec((n, tk), lambda j, k: (0, k)),    # x  (K-tiled)
            pl.BlockSpec((tk, tn), lambda j, k: (k, j)),   # W^T tiles
            pl.BlockSpec((1, tn), lambda j, k: (0, j)),    # gamma (per-j only)
            pl.BlockSpec((1, tn), lambda j, k: (0, j)),    # beta  (per-j only)
        ],
        out_specs=pl.BlockSpec((n, tn), lambda j, k: (0, j)),
        scratch_shapes=[pltpu.VMEM((n, tn), jnp.float32)],
        compiler_params=pltpu.CompilerParams(
            dimension_semantics=("parallel", "arbitrary"),
            vmem_limit_bytes=vmem_limit,
        ),
    )(x, wt, g2, b2)


def _reference(x, weight, bias, gamma, beta):
    y = x @ weight.T + bias
    mean = jnp.mean(y, axis=0, keepdims=True)
    var = jnp.mean((y - mean) ** 2, axis=0, keepdims=True)
    z = (y - mean) / jnp.sqrt(var + BN_EPS) * gamma + beta
    return z * jax.nn.sigmoid(z)


def _make_inputs(key, n, in_f, out_f):
    k1, k2, k3, k4, k5 = jax.random.split(key, 5)
    x = jax.random.normal(k1, (n, in_f), dtype=jnp.float32)
    bound = 1.0 / (in_f ** 0.5)
    weight = jax.random.uniform(k2, (out_f, in_f), minval=-bound, maxval=bound,
                                dtype=jnp.float32)
    bias = jax.random.uniform(k3, (out_f,), minval=-bound, maxval=bound,
                              dtype=jnp.float32)
    gamma = jnp.ones((out_f,), jnp.float32) + 0.1 * jax.random.normal(k4, (out_f,))
    beta = 0.1 * jax.random.normal(k5, (out_f,))
    return x, weight, bias, gamma, beta


if __name__ == "__main__":
    key = jax.random.PRNGKey(0)
    k_small, k_big = jax.random.split(key)

    # Toy case matching the module spec (batch=8, in=32, out=32): single block.
    x, w, b, g, be = _make_inputs(k_small, 8, 32, 32)
    out = jax.block_until_ready(mlp_layer(x, w, g, be, bias=b))
    ref = _reference(x, w, b, g, be)
    assert out.shape == (8, 32)
    assert jnp.allclose(out, ref, atol=1e-4, rtol=1e-4)

    # Lane-dense case exercising both grid axes (2 output slabs x K tiles).
    x, w, b, g, be = _make_inputs(k_big, 128, 256, 512)
    out = jax.block_until_ready(mlp_layer(x, w, g, be, bias=b))
    ref = _reference(x, w, b, g, be)
    assert out.shape == (128, 512)
    assert jnp.allclose(out, ref, atol=1e-4, rtol=1e-4)

    print("KERNEL_OK")
</pallas_src>

<mosaic_0001>
module attributes {stable_mosaic.version = 11 : i64} {
  func.func @_mlp_layer_kernel(%arg0: i32, %arg1: i32, %arg2: memref<8x32xf32, #tpu.memory_space<vmem>>, %arg3: memref<32x32xf32, #tpu.memory_space<vmem>>, %arg4: memref<1x32xf32, #tpu.memory_space<vmem>>, %arg5: memref<1x32xf32, #tpu.memory_space<vmem>>, %arg6: memref<8x32xf32, #tpu.memory_space<vmem>>, %arg7: memref<8x32xf32, #tpu.memory_space<vmem>>) attributes {dimension_semantics = [#tpu.dimension_semantics<parallel>, #tpu.dimension_semantics<arbitrary>], iteration_bounds = array<i64: 1, 1>, scalar_prefetch = 0 : i64, scratch_operands = 1 : i64, tpu.core_type = #tpu.core_type<tc>, window_params = [{transform_indices = @transform_0, window_bounds = array<i64: 8, 32>}, {transform_indices = @transform_1, window_bounds = array<i64: 32, 32>}, {transform_indices = @transform_2, window_bounds = array<i64: 1, 32>}, {transform_indices = @transform_3, window_bounds = array<i64: 1, 32>}, {transform_indices = @transform_4, window_bounds = array<i64: 8, 32>}]} {
    %c0_i32 = arith.constant 0 : i32
    %0 = arith.cmpi eq, %arg1, %c0_i32 : i32
    %1 = arith.extui %0 : i1 to i32
    %c0_i32_0 = arith.constant 0 : i32
    %2 = arith.cmpi ne, %1, %c0_i32_0 : i32
    scf.if %2 {
      %cst_10 = arith.constant 0.000000e+00 : f32
      %12 = vector.broadcast %cst_10 : f32 to vector<8x32xf32>
      %c0_11 = arith.constant 0 : index
      %c0_12 = arith.constant 0 : index
      %13 = vector.load %arg7[%c0_11, %c0_12] : memref<8x32xf32, #tpu.memory_space<vmem>>, vector<8x32xf32>
      tpu.vector_store %arg7[%c0_11, %c0_12], %12 {strides = array<i32>} : memref<8x32xf32, #tpu.memory_space<vmem>>, vector<8x32xf32>,
    } else {
    }
    %c0 = arith.constant 0 : index
    %c0_1 = arith.constant 0 : index
    %3 = vector.load %arg7[%c0, %c0_1] : memref<8x32xf32, #tpu.memory_space<vmem>>, vector<8x32xf32>
    %c0_2 = arith.constant 0 : index
    %c0_3 = arith.constant 0 : index
    %4 = vector.load %arg2[%c0_2, %c0_3] : memref<8x32xf32, #tpu.memory_space<vmem>>, vector<8x32xf32>
    %c0_4 = arith.constant 0 : index
    %c0_5 = arith.constant 0 : index
    %5 = vector.load %arg3[%c0_4, %c0_5] : memref<32x32xf32, #tpu.memory_space<vmem>>, vector<32x32xf32>
    %cst = arith.constant dense<0.000000e+00> : vector<8x32xf32>
    %6 = tpu.matmul %4, %5, %cst {dimension_numbers = #tpu.dot_dimension_numbers<[1], [0], [0], [1], [0, 0, 1, 1], [], []>} : vector<8x32xf32>, vector<32x32xf32>, vector<8x32xf32> -> vector<8x32xf32>
    %7 = arith.addf %3, %6 : vector<8x32xf32>
    %c0_6 = arith.constant 0 : index
    %c0_7 = arith.constant 0 : index
    %8 = vector.load %arg7[%c0_6, %c0_7] : memref<8x32xf32, #tpu.memory_space<vmem>>, vector<8x32xf32>
    tpu.vector_store %arg7[%c0_6, %c0_7], %7 {strides = array<i32>} : memref<8x32xf32, #tpu.memory_space<vmem>>, vector<8x32xf32>,
    %c0_i32_8 = arith.constant 0 : i32
    %9 = arith.cmpi eq, %arg1, %c0_i32_8 : i32
    %10 = arith.extui %9 : i1 to i32
    %c0_i32_9 = arith.constant 0 : i32
    %11 = arith.cmpi ne, %10, %c0_i32_9 : i32
    scf.if %11 {
      %c0_10 = arith.constant 0 : index
      %c0_11 = arith.constant 0 : index
      %12 = vector.load %arg7[%c0_10, %c0_11] : memref<8x32xf32, #tpu.memory_space<vmem>>, vector<8x32xf32>
      %cst_12 = arith.constant dense<0.000000e+00> : vector<32xf32>
      %13 = vector.multi_reduction <add>, %12, %cst_12 [0] : vector<8x32xf32> to vector<32xf32>
      %14 = vector.shape_cast %13 : vector<32xf32> to vector<1x32xf32>
      %cst_13 = arith.constant 1.250000e-01 : f32
      %15 = vector.broadcast %cst_13 : f32 to vector<1x32xf32>
      %16 = arith.mulf %14, %15 : vector<1x32xf32>
      %17 = vector.broadcast %16 : vector<1x32xf32> to vector<8x32xf32>
      %18 = arith.subf %12, %17 : vector<8x32xf32>
      %19 = arith.mulf %18, %18 : vector<8x32xf32>
      %cst_14 = arith.constant dense<0.000000e+00> : vector<32xf32>
      %20 = vector.multi_reduction <add>, %19, %cst_14 [0] : vector<8x32xf32> to vector<32xf32>
      %21 = vector.shape_cast %20 : vector<32xf32> to vector<1x32xf32>
      %cst_15 = arith.constant 1.250000e-01 : f32
      %22 = vector.broadcast %cst_15 : f32 to vector<1x32xf32>
      %23 = arith.mulf %21, %22 : vector<1x32xf32>
      %c0_16 = arith.constant 0 : index
      %c0_17 = arith.constant 0 : index
      %24 = vector.load %arg4[%c0_16, %c0_17] : memref<1x32xf32, #tpu.memory_space<vmem>>, vector<1x32xf32>
      %cst_18 = arith.constant 9.99999974E-6 : f32
      %25 = vector.broadcast %cst_18 : f32 to vector<1x32xf32>
      %26 = arith.addf %23, %25 : vector<1x32xf32>
      %27 = math.rsqrt %26 : vector<1x32xf32>
      %28 = arith.mulf %24, %27 : vector<1x32xf32>
      %29 = vector.broadcast %28 : vector<1x32xf32> to vector<8x32xf32>
      %30 = arith.mulf %18, %29 : vector<8x32xf32>
      %c0_19 = arith.constant 0 : index
      %c0_20 = arith.constant 0 : index
      %31 = vector.load %arg5[%c0_19, %c0_20] : memref<1x32xf32, #tpu.memory_space<vmem>>, vector<1x32xf32>
      %32 = vector.broadcast %31 : vector<1x32xf32> to vector<8x32xf32>
      %33 = arith.addf %30, %32 : vector<8x32xf32>
      %34 = arith.negf %33 : vector<8x32xf32>
      %35 = math.exp %34 : vector<8x32xf32>
      %cst_21 = arith.constant 1.000000e+00 : f32
      %36 = vector.broadcast %cst_21 : f32 to vector<8x32xf32>
      %37 = arith.addf %36, %35 : vector<8x32xf32>
      %38 = arith.divf %36, %37 : vector<8x32xf32>
      %39 = arith.mulf %33, %38 : vector<8x32xf32>
      %c0_22 = arith.constant 0 : index
      %c0_23 = arith.constant 0 : index
      %40 = vector.load %arg6[%c0_22, %c0_23] : memref<8x32xf32, #tpu.memory_space<vmem>>, vector<8x32xf32>
      tpu.vector_store %arg6[%c0_22, %c0_23], %39 {strides = array<i32>} : memref<8x32xf32, #tpu.memory_space<vmem>>, vector<8x32xf32>,
    } else {
    }
    return
  }
  func.func @transform_0(%arg0: i32, %arg1: i32) -> (i32, i32) {
    %c0_i32 = arith.constant 0 : i32
    %c0_i32_0 = arith.constant 0 : i32
    return %c0_i32, %arg1 : i32, i32
  }
  func.func @transform_1(%arg0: i32, %arg1: i32) -> (i32, i32) {
    %c0_i32 = arith.constant 0 : i32
    return %arg1, %arg0 : i32, i32
  }
  func.func @transform_2(%arg0: i32, %arg1: i32) -> (i32, i32) {
    %c0_i32 = arith.constant 0 : i32
    %c0_i32_0 = arith.constant 0 : i32
    return %c0_i32, %arg0 : i32, i32
  }
  func.func @transform_3(%arg0: i32, %arg1: i32) -> (i32, i32) {
    %c0_i32 = arith.constant 0 : i32
    %c0_i32_0 = arith.constant 0 : i32
    return %c0_i32, %arg0 : i32, i32
  }
  func.func @transform_4(%arg0: i32, %arg1: i32) -> (i32, i32) {
    %c0_i32 = arith.constant 0 : i32
    %c0_i32_0 = arith.constant 0 : i32
    return %c0_i32, %arg0 : i32, i32
  }
}

</mosaic_0001>

<llo_original>
// kernel: tpu_custom_call.1
$region0: #{tpu_custom_call.1}
  #allocation0 [shape = 'u32[]', space=smem, size = 0x4, offset = 0x4, fixed_abs, tag = 'smem constant byte address 0x4 - core index']
  #allocation1 [shape = 'u32[144,128]{1,0:T(1,128)}', space=vmem, size = 0x12000, scoped, tag = 'internal scratch']
  #allocation2 [shape = 'f32[8,32]{1,0:T(8,128)}', space=vmem, size = 0x1000, scoped, tag = 'scratch operand']
  %s0 = inlined_call_operand.hbm [shape: f32[8,32], index: 0, kind: input, shape index: {}]
  %s1 = inlined_call_operand.hbm [shape: f32[32,32], index: 1, kind: input, shape index: {}]
  %s2 = inlined_call_operand.vmem [shape: f32[1,32], index: 2, kind: input, shape index: {}]
  %s3 = inlined_call_operand.vmem [shape: f32[1,32], index: 3, kind: input, shape index: {}]
  %s4 = inlined_call_operand.hbm [shape: f32[8,32], index: 4, kind: output, shape index: {}]
  %s5 = sld [smem:[#allocation0]]
  $region42: #{tpu_custom_call.1} parent=0
    _
  %s7 = ssub.s32 1, %s5
  %s8 = scalar_select 0, %s7, %s5
  $region1: #{tpu_custom_call.1} parent=0
    #allocation3 [shape = 'u8[4096]{0}', space=vmem, size = 0x1000, scoped, tag = 'input window, operand 0, single buffered']
    #allocation4 [shape = 's32[1]{0}', space=sflag, size = 0x4, scoped, tag = 'scoped memory for tpu_custom_call.1']
    #allocation5 [shape = 's32[1]{0}', space=sflag, size = 0x4, scoped, tag = 'scoped memory for tpu_custom_call.1']
    #allocation6 [shape = 'u8[16384]{0}', space=vmem, size = 0x4000, scoped, tag = 'input window, operand 1, single buffered']
    #allocation7 [shape = 's32[1]{0}', space=sflag, size = 0x4, scoped, tag = 'scoped memory for tpu_custom_call.1']
    #allocation8 [shape = 'u8[4096]{0}', space=vmem, size = 0x1000, scoped, tag = 'output window, operand 0, single buffered']
    %9 = vsyncpa [#allocation4], 0
    %10 = vsyncpa [#allocation7], 0
    %11 = vsyncpa [#allocation5], 0
    // Predicated region
    $region2: #{tpu_custom_call.1} parent=1 // pred_check
      _
    $region3: #{tpu_custom_call.1} parent=1 // pred_check_branch
      %13 = sbr.rel (0) target = $region5
    $region4: #{tpu_custom_call.1} parent=1 // pred_region
      %s15 = ssub.s32 128, 128
      %16 = vsyncadd [#allocation4], %s15
      %s18 = sshll.u32 [#allocation3], 4
      %s19 = int_to_ptr.vmem [resolvable:$true] %s18
      %21 = dma.hbm_to_vmem [thread:$0]  %s0, 128, %s19, [#allocation4]
    $region5: #{tpu_custom_call.1} parent=1 // pred_fallthru
      _
    // Predicated region
    $region6: #{tpu_custom_call.1} parent=1 // pred_check
      _
    $region7: #{tpu_custom_call.1} parent=1 // pred_check_branch
      %23 = sbr.rel (0) target = $region9
    $region8: #{tpu_custom_call.1} parent=1 // pred_region
      %s25 = ssub.s32 512, 512
      %26 = vsyncadd [#allocation7], %s25
      %s27 = sshll.u32 [#allocation6], 4
      %s28 = int_to_ptr.vmem [resolvable:$true] %s27
      %33 = dma.hbm_to_vmem [thread:$0]  %s1, 512, %s28, [#allocation7], 128, 128, 8
    $region9: #{tpu_custom_call.1} parent=1 // pred_fallthru
      _
    // Predicated region
    $region10: #{tpu_custom_call.1} parent=1 // pred_check
      _
    $region11: #{tpu_custom_call.1} parent=1 // pred_check_branch
      %35 = sbr.rel (0) target = $region13
    $region12: #{tpu_custom_call.1} parent=1 // pred_region
      _
    $region13: #{tpu_custom_call.1} parent=1 // pred_fallthru
      _
    // Predicated region
    $region14: #{tpu_custom_call.1} parent=1 // pred_check
      _
    $region15: #{tpu_custom_call.1} parent=1 // pred_check_branch
      %37 = sbr.rel (0) target = $region17
    $region16: #{tpu_custom_call.1} parent=1 // pred_region
      _
    $region17: #{tpu_custom_call.1} parent=1 // pred_fallthru
      _
    // Predicated region
    $region18: #{tpu_custom_call.1} parent=1 // pred_check
      _
    $region19: #{tpu_custom_call.1} parent=1 // pred_check_branch
      %39 = sbr.rel (0) target = $region21
    $region20: #{tpu_custom_call.1} parent=1 // pred_region
      %40 = dma.done [#allocation4], 128
    $region21: #{tpu_custom_call.1} parent=1 // pred_fallthru
      _
    // Predicated region
    $region22: #{tpu_custom_call.1} parent=1 // pred_check
      _
    $region23: #{tpu_custom_call.1} parent=1 // pred_check_branch
      %42 = sbr.rel (0) target = $region25
    $region24: #{tpu_custom_call.1} parent=1 // pred_region
      %43 = dma.done [#allocation7], 512
    $region25: #{tpu_custom_call.1} parent=1 // pred_fallthru
      _
    %p44 = scmp.eq.s32.totalorder 0, 0
    // Predicated region
    $region26: #{tpu_custom_call.1} parent=1 // pred_check
      %p45 = pneg %p44
    $region27: #{tpu_custom_call.1} parent=1 // pred_check_branch
      %47 = sbr.rel (%p45) target = $region29
    $region28: #{tpu_custom_call.1} parent=1 // pred_region
      %vm48 = vcmask 261120
      %49 = vst.msk [vmem:[#allocation2] sm:$0xff] %vm48, 0.0
    $region29: #{tpu_custom_call.1} parent=1 // pred_fallthru
      _
    %v50 = vld [vmem:[#allocation2] sm:$0xff]
    %v51 = vld [vmem:[#allocation3] sm:$0xff]
    %v52 = vld [vmem:[#allocation6] sm:$0xff]
    %v53 = vld [vmem:[#allocation6 + $0x8] sm:$0xff]
    %v54 = vld [vmem:[#allocation6 + $0x10] sm:$0xff]
    %v55 = vld [vmem:[#allocation6 + $0x18] sm:$0xff]
    %vm56 = vcmask 261120
    %v58 = vsel %vm56, %v51, 0
    %60 = vmatprep.subr.mxu0 0.0
    %61 = vmatpush1.msra.mxu0 0.0
    %62 = vmatprep.subr.mxu0 0.0
    %63 = vmatpush1.msra.mxu0 0.0
    %64 = vmatprep.subr.mxu0 0.0
    %65 = vmatpush1.msra.mxu0 0.0
    %66 = vmatprep.subr.mxu0 0.0
    %67 = vmatpush1.msra.mxu0 0.0
    %68 = vmatprep.subr.mxu0 0.0
    %69 = vmatpush1.msra.mxu0 0.0
    %70 = vmatprep.subr.mxu0 0.0
    %71 = vmatpush1.msra.mxu0 0.0
    %72 = vmatprep.subr.mxu0 0.0
    %73 = vmatpush1.msra.mxu0 0.0
    %74 = vmatprep.subr.mxu0 0.0
    %75 = vmatpush1.msra.mxu0 0.0
    %76 = vmatprep.subr.mxu0 0.0
    %77 = vmatpush1.msra.mxu0 0.0
    %78 = vmatprep.subr.mxu0 0.0
    %79 = vmatpush1.msra.mxu0 0.0
    %80 = vmatprep.subr.mxu0 0.0
    %81 = vmatpush1.msra.mxu0 0.0
    %82 = vmatprep.subr.mxu0 0.0
    %83 = vmatpush1.msra.mxu0 0.0
    %84 = vmatprep.subr.mxu0 0.0
    %85 = vmatpush1.msra.mxu0 %v55
    %86 = vmatprep.subr.mxu0 0.0
    %87 = vmatpush1.msra.mxu0 %v54
    %88 = vmatprep.subr.mxu0 0.0
    %89 = vmatpush1.msra.mxu0 %v53
    %90 = vmatprep.subr.mxu0 0.0
    %91 = vmatpush1.msra.mxu0 %v52
    %92 = vmatprep.subr.mxu0 0.0
    %93 = vmatpush2.msra.mxu0 0.0
    %94 = vmatprep.subr.mxu0 0.0
    %95 = vmatpush2.msra.mxu0 0.0
    %96 = vmatprep.subr.mxu0 0.0
    %97 = vmatpush2.msra.mxu0 0.0
    %98 = vmatprep.subr.mxu0 0.0
    %99 = vmatpush2.msra.mxu0 0.0
    %100 = vmatprep.subr.mxu0 0.0
    %101 = vmatpush2.msra.mxu0 0.0
    %102 = vmatprep.subr.mxu0 0.0
    %103 = vmatpush2.msra.mxu0 0.0
    %104 = vmatprep.subr.mxu0 0.0
    %105 = vmatpush2.msra.mxu0 0.0
    %106 = vmatprep.subr.mxu0 0.0
    %107 = vmatpush2.msra.mxu0 0.0
    %108 = vmatprep.subr.mxu0 0.0
    %109 = vmatpush2.msra.mxu0 0.0
    %110 = vmatprep.subr.mxu0 0.0
    %111 = vmatpush2.msra.mxu0 0.0
    %112 = vmatprep.subr.mxu0 0.0
    %113 = vmatpush2.msra.mxu0 0.0
    %114 = vmatprep.subr.mxu0 0.0
    %115 = vmatpush2.msra.mxu0 0.0
    %116 = vmatprep.subr.mxu0 0.0
    %117 = vmatpush2.msra.mxu0 0.0
    %118 = vmatprep.subr.mxu0 0.0
    %119 = vmatpush2.msra.mxu0 0.0
    %120 = vmatprep.subr.mxu0 0.0
    %121 = vmatpush2.msra.mxu0 0.0
    %122 = vmatprep.subr.mxu0 0.0
    %123 = vmatpush2.msra.mxu0 0.0
    %124 = vmatprep.mubr.f32.mxu0 0.0
    %125 = vmatmul.mubr.f32.gmra.mxu0 %v58
    %v126 = vpop.f32.mrf.mxu0
    %v127 = vadd.f32 0.0, %v126
    %v128 = vpop.f32.mrf.mxu0
    %129 = vdwg.mxu0
    %v130 = vadd.f32 %v50, %v127
    %131 = vst.msk [vmem:[#allocation2] sm:$0xff] %vm56, %v130
    // Predicated region
    $region30: #{tpu_custom_call.1} parent=1 // pred_check
      %p132 = pneg %p44
    $region31: #{tpu_custom_call.1} parent=1 // pred_check_branch
      %134 = sbr.rel (%p132) target = $region33
    $region32: #{tpu_custom_call.1} parent=1 // pred_region
      %v135 = vld [vmem:[#allocation2] sm:$0xff]
      %v136 = vsel %vm56, %v135, 0.0
      %v137 = vrot.slane %v136, 4
      %v138 = vadd.f32 %v136, %v137
      %v139 = vrot.slane %v138, 2
      %v140 = vadd.f32 %v138, %v139
      %v141 = vrot.slane %v140, 1
      %v142 = vadd.f32 %v140, %v141
      %v143 = vmul.f32 %v142, 0.125
      %v144 = vsub.f32 %v135, %v143
      %v145 = vmul.f32 %v144, %v144
      %v146 = vsel %vm56, %v145, 0.0
      %v147 = vrot.slane %v146, 4
      %v148 = vadd.f32 %v146, %v147
      %v149 = vrot.slane %v148, 2
      %v150 = vadd.f32 %v148, %v149
      %v151 = vrot.slane %v150, 1
      %v152 = vadd.f32 %v150, %v151
      %v153 = vmul.f32 %v152, 0.125
      %v154 = vld [vmem:[%s2] sm:$0x1]
      %v155 = vadd.f32 %v153, 1e-05
      %v156 = vrsqrt.pop %v155
      %v157 = vmul.f32 %v154, %v156
      %v159 = vlaneseq
      %v160 = vshrl.u32 %v159, 7
      %v161 = vsub.s32 0, %v160
      %v162 = vrot.slane %v157, %v161
      %v164 = vmul.f32 %v144, %v162
      %v165 = vld [vmem:[%s3] sm:$0x1]
      %v167 = vlaneseq
      %v168 = vshrl.u32 %v167, 7
      %v169 = vsub.s32 0, %v168
      %v170 = vrot.slane %v165, %v169
      %v172 = vadd.f32 %v164, %v170
      %v173 = vxor.u32 %v172, 2147483648
      %v174 = vmul.f32 %v173, 1.442695
      %v175 = vpow.pop %v174
      %v176 = vadd.f32 %v175, 1.0
      %v177 = vrcp.pop %v176
      %v178 = vmul.f32 1.0, %v177
      %v179 = vmul.f32 %v172, %v178
      %180 = vst.msk [vmem:[#allocation8] sm:$0xff] %vm56, %v179
    $region33: #{tpu_custom_call.1} parent=1 // pred_fallthru
      _
    // Predicated region
    $region34: #{tpu_custom_call.1} parent=1 // pred_check
      _
    $region35: #{tpu_custom_call.1} parent=1 // pred_check_branch
      %182 = sbr.rel (0) target = $region37
    $region36: #{tpu_custom_call.1} parent=1 // pred_region
      %s184 = ssub.s32 128, 128
      %185 = vsyncadd [#allocation5], %s184
      %s187 = sshll.u32 [#allocation8], 4
      %s188 = int_to_ptr.vmem [resolvable:$true] %s187
      %190 = dma.vmem_to_hbm [thread:$0]  %s188, 128, %s4, [#allocation5]
    $region37: #{tpu_custom_call.1} parent=1 // pred_fallthru
      _
    // Predicated region
    $region38: #{tpu_custom_call.1} parent=1 // pred_check
      _
    $region39: #{tpu_custom_call.1} parent=1 // pred_check_branch
      %192 = sbr.rel (0) target = $region41
    $region40: #{tpu_custom_call.1} parent=1 // pred_region
      %193 = dma.done [#allocation5], 128
    $region41: #{tpu_custom_call.1} parent=1 // pred_fallthru
      _
    %194 = vsyncpa [#allocation4], 1
    %195 = vsyncpa [#allocation7], 1
    %196 = vsyncpa [#allocation5], 1

</llo_original>
